<compile_context>
chip_gen: v7x
topology: tpu7x:2x2x1
jax: 0.10.0
libtpu: 0.0.40
codegen_flags: <defaults>
</compile_context>

<pallas_src>
import jax
import jax.numpy as jnp
from jax.experimental import pallas as pl
from jax.experimental.pallas import tpu as pltpu


def _round_up(a: int, m: int) -> int:
    return ((a + m - 1) // m) * m


def _vo_gram_kernel(x_ref, w1t_ref, g_ref):
    """Per core: accumulate G += h1^T h1 with h1 = x_tile @ w1t."""
    i = pl.program_id(1)  # reduction axis over row tiles

    @pl.when(i == 0)
    def _():
        g_ref[...] = jnp.zeros_like(g_ref)

    # (tm, H) @ (H, R) -> (tm, R); MXU with f32 accumulation, no transposes.
    h1 = jnp.dot(x_ref[...], w1t_ref[...], preferred_element_type=jnp.float32)
    # Gram update: contract over the row-tile axis -> (R, R).
    g = jax.lax.dot_general(
        h1, h1, (((0,), (0,)), ((), ())), preferred_element_type=jnp.float32
    )
    g_ref[...] += g[None, :, :]


def _gram_pallas(x_p, w1t_p, *, num_cores, tm):
    """x_p: (M_pad, H_pad), w1t_p: (H_pad, R_pad). Returns (num_cores, R_pad, R_pad)."""
    M_pad, H_pad = x_p.shape
    R_pad = w1t_p.shape[1]
    steps = M_pad // (num_cores * tm)

    x_bytes = jnp.dtype(x_p.dtype).itemsize
    need = (2 * tm * H_pad * x_bytes          # double-buffered x tiles
            + 2 * H_pad * R_pad * x_bytes     # w1t buffers (constant index map)
            + 2 * R_pad * R_pad * 4)          # resident per-core Gram accumulator
    # Stay below v7x's 64 MiB physical VMEM while lifting the default scoped limit.
    vmem_limit = int(min(max(2 * need, 32 * 1024 * 1024), 48 * 1024 * 1024))

    return pl.pallas_call(
        _vo_gram_kernel,
        out_shape=jax.ShapeDtypeStruct((num_cores, R_pad, R_pad), jnp.float32),
        grid_spec=pltpu.PrefetchScalarGridSpec(
            num_scalar_prefetch=0,
            grid=(num_cores, steps),
            in_specs=[
                # each core streams its own contiguous chunk of row tiles
                pl.BlockSpec((tm, H_pad), lambda c, i: (c * steps + i, 0)),
                # small constant weight block (fetched once, index map constant)
                pl.BlockSpec((H_pad, R_pad), lambda c, i: (0, 0)),
            ],
            out_specs=pl.BlockSpec((1, R_pad, R_pad), lambda c, i: (c, 0, 0)),
        ),
        compiler_params=pltpu.CompilerParams(
            dimension_semantics=("parallel", "arbitrary"),
            vmem_limit_bytes=vmem_limit,
        ),
    )(x_p, w1t_p)


def vo_predictor_norms(x, w1, w2, *, num_cores=2, tm=None):
    """x: (B,S,H); w1: (rank,H); w2: (H,rank). Returns (H,) column L2 norms of
    ((x @ w1.T) @ w2.T) flattened over (B, S)."""
    B, S, H = x.shape
    rank = w1.shape[0]
    M = B * S

    x_flat = x.reshape(M, H)
    x_bytes = jnp.dtype(x_flat.dtype).itemsize

    # Lane-dense padding; zero padding is exact for the Gram / sum-of-squares path.
    H_pad = _round_up(H, 128)
    R_pad = _round_up(rank, 128)

    # Pre-transpose the small constant weights once; match the activation dtype
    # so the MXU sees homogeneous inputs (accumulation stays f32).
    w1t = jnp.asarray(w1).astype(x_flat.dtype).T      # (H, rank)
    w2t = jnp.asarray(w2).astype(jnp.float32).T       # (rank, H), used in finalize

    w1t_p = jnp.zeros((H_pad, R_pad), x_flat.dtype).at[:H, :rank].set(w1t)
    w2t_p = jnp.zeros((R_pad, H_pad), jnp.float32).at[:rank, :H].set(w2t)

    # Row tile: as large as a ~16 MiB double-buffered x budget allows.
    if tm is None:
        cap = (16 * 1024 * 1024) // max(1, 2 * H_pad * x_bytes)
        cap = (max(8, min(2048, cap)) // 8) * 8
        per_core_rows = -(-M // num_cores)  # ceil
        tm = min(cap, _round_up(max(1, per_core_rows), 8))
    chunk = num_cores * tm
    M_pad = _round_up(M, chunk)

    x_p = x_flat
    if H_pad != H:
        x_p = jnp.pad(x_p, ((0, 0), (0, H_pad - H)))
    if M_pad != M:
        x_p = jnp.pad(x_p, ((0, M_pad - M), (0, 0)))

    g_partial = _gram_pallas(x_p, w1t_p, num_cores=num_cores, tm=tm)
    g = jnp.sum(g_partial, axis=0)                    # (R_pad, R_pad)

    # norms^2[j] = w2[j, :] @ G @ w2[j, :]^T  — tiny one-shot finalize in plain JAX.
    norms2 = jnp.sum(w2t_p * (g @ w2t_p), axis=0)     # (H_pad,)
    return jnp.sqrt(jnp.maximum(norms2, 0.0))[:H]


def vo_predictor_forward(x, w1, w2, sparsity, *, num_cores=2, tm=None):
    """x: (B, S, H). Returns int32 indices of the top-k hidden dims by L2 norm."""
    H = x.shape[-1]
    norms = vo_predictor_norms(x, w1, w2, num_cores=num_cores, tm=tm)
    k = int(H * (1.0 - sparsity))
    # TODO(synk): top-k index selection has no clean Pallas TPU primitive; done
    # in plain JAX on the tiny (H,) vector.
    _, idx = jax.lax.top_k(norms, k)
    return idx.reshape(-1)


if __name__ == "__main__":
    key = jax.random.PRNGKey(0)
    B, S, H, rank = 2, 8, 32, 8
    sparsity = 0.5

    k_x, k_w1, k_w2 = jax.random.split(key, 3)
    x = jax.random.normal(k_x, (B, S, H), dtype=jnp.float32)
    w1 = jax.random.normal(k_w1, (rank, H), dtype=jnp.float32)
    w2 = jax.random.normal(k_w2, (H, rank), dtype=jnp.float32)

    norms = vo_predictor_norms(x, w1, w2)
    idx = vo_predictor_forward(x, w1, w2, sparsity)
    jax.block_until_ready(idx)

    # Reference check in plain JAX.
    h = (x.reshape(B * S, H) @ w1.T) @ w2.T
    ref_norm = jnp.sqrt(jnp.sum(h * h, axis=0))
    k = int(H * (1.0 - sparsity))
    ref_idx = jax.lax.top_k(ref_norm, k)[1]

    assert jnp.allclose(norms, ref_norm, rtol=1e-4, atol=1e-4), (norms, ref_norm)
    # Compare as sets: the Gram reformulation changes f32 summation order, which
    # could flip ordering only for exactly-tied norms.
    assert jnp.array_equal(jnp.sort(idx), jnp.sort(ref_idx)), (idx, ref_idx)

    print("KERNEL_OK")
</pallas_src>

<mosaic_0001>
module attributes {stable_mosaic.version = 11 : i64} {
  func.func @_vo_gram_kernel(%arg0: i32, %arg1: i32, %arg2: memref<8x128xf32, #tpu.memory_space<vmem>>, %arg3: memref<128x128xf32, #tpu.memory_space<vmem>>, %arg4: memref<1x128x128xf32, #tpu.memory_space<vmem>>) attributes {dimension_semantics = [#tpu.dimension_semantics<parallel>, #tpu.dimension_semantics<arbitrary>], iteration_bounds = array<i64: 2, 1>, scalar_prefetch = 0 : i64, scratch_operands = 0 : i64, tpu.core_type = #tpu.core_type<tc>, window_params = [{transform_indices = @transform_0, window_bounds = array<i64: 8, 128>}, {pipeline_mode = #tpu.pipeline_mode<synchronous>, transform_indices = @transform_1, window_bounds = array<i64: 128, 128>}, {transform_indices = @transform_2, window_bounds = array<i64: 1, 128, 128>}]} {
    %c0_i32 = arith.constant 0 : i32
    %0 = arith.cmpi eq, %arg1, %c0_i32 : i32
    %1 = arith.extui %0 : i1 to i32
    %c0_i32_0 = arith.constant 0 : i32
    %2 = arith.cmpi ne, %1, %c0_i32_0 : i32
    scf.if %2 {
      %cst_11 = arith.constant 0.000000e+00 : f32
      %11 = vector.broadcast %cst_11 : f32 to vector<1x128x128xf32>
      %c0_12 = arith.constant 0 : index
      %c0_13 = arith.constant 0 : index
      %c0_14 = arith.constant 0 : index
      %12 = vector.load %arg4[%c0_12, %c0_13, %c0_14] : memref<1x128x128xf32, #tpu.memory_space<vmem>>, vector<1x128x128xf32>
      tpu.vector_store %arg4[%c0_12, %c0_13, %c0_14], %11 {strides = array<i32>} : memref<1x128x128xf32, #tpu.memory_space<vmem>>, vector<1x128x128xf32>,
    } else {
    }
    %c0 = arith.constant 0 : index
    %c0_1 = arith.constant 0 : index
    %3 = vector.load %arg2[%c0, %c0_1] : memref<8x128xf32, #tpu.memory_space<vmem>>, vector<8x128xf32>
    %c0_2 = arith.constant 0 : index
    %c0_3 = arith.constant 0 : index
    %4 = vector.load %arg3[%c0_2, %c0_3] : memref<128x128xf32, #tpu.memory_space<vmem>>, vector<128x128xf32>
    %cst = arith.constant dense<0.000000e+00> : vector<8x128xf32>
    %5 = tpu.matmul %3, %4, %cst {dimension_numbers = #tpu.dot_dimension_numbers<[1], [0], [0], [1], [0, 0, 1, 1], [], []>} : vector<8x128xf32>, vector<128x128xf32>, vector<8x128xf32> -> vector<8x128xf32>
    %cst_4 = arith.constant dense<0.000000e+00> : vector<128x128xf32>
    %6 = tpu.matmul %5, %5, %cst_4 {dimension_numbers = #tpu.dot_dimension_numbers<[0], [0], [1], [1], [0, 1, 1, 1], [], []>} : vector<8x128xf32>, vector<8x128xf32>, vector<128x128xf32> -> vector<128x128xf32>
    %c0_5 = arith.constant 0 : index
    %c0_6 = arith.constant 0 : index
    %c0_7 = arith.constant 0 : index
    %7 = vector.load %arg4[%c0_5, %c0_6, %c0_7] : memref<1x128x128xf32, #tpu.memory_space<vmem>>, vector<1x128x128xf32>
    %8 = vector.shape_cast %6 : vector<128x128xf32> to vector<1x128x128xf32>
    %9 = arith.addf %7, %8 : vector<1x128x128xf32>
    %c0_8 = arith.constant 0 : index
    %c0_9 = arith.constant 0 : index
    %c0_10 = arith.constant 0 : index
    %10 = vector.load %arg4[%c0_8, %c0_9, %c0_10] : memref<1x128x128xf32, #tpu.memory_space<vmem>>, vector<1x128x128xf32>
    tpu.vector_store %arg4[%c0_8, %c0_9, %c0_10], %9 {strides = array<i32>} : memref<1x128x128xf32, #tpu.memory_space<vmem>>, vector<1x128x128xf32>,
    return
  }
  func.func @transform_0(%arg0: i32, %arg1: i32) -> (i32, i32) {
    %c1_i32 = arith.constant 1 : i32
    %0 = arith.muli %arg0, %c1_i32 : i32
    %1 = arith.addi %0, %arg1 : i32
    %c0_i32 = arith.constant 0 : i32
    %c0_i32_0 = arith.constant 0 : i32
    return %1, %c0_i32 : i32, i32
  }
  func.func @transform_1(%arg0: i32, %arg1: i32) -> (i32, i32) {
    %c0_i32 = arith.constant 0 : i32
    %c0_i32_0 = arith.constant 0 : i32
    %c0_i32_1 = arith.constant 0 : i32
    return %c0_i32, %c0_i32_0 : i32, i32
  }
  func.func @transform_2(%arg0: i32, %arg1: i32) -> (i32, i32, i32) {
    %c0_i32 = arith.constant 0 : i32
    %c0_i32_0 = arith.constant 0 : i32
    %c0_i32_1 = arith.constant 0 : i32
    return %arg0, %c0_i32, %c0_i32_0 : i32, i32, i32
  }
}

</mosaic_0001>

<llo_original>
// kernel: tpu_custom_call.1
$region0: #{tpu_custom_call.1}
  #allocation0 [shape = 'u32[]', space=smem, size = 0x4, offset = 0x4, fixed_abs, tag = 'smem constant byte address 0x4 - core index']
  #allocation1 [shape = 'u32[144,128]{1,0:T(1,128)}', space=vmem, size = 0x12000, scoped, tag = 'internal scratch']
  %s0 = inlined_call_operand.hbm [shape: f32[16,128], index: 0, kind: input, shape index: {}]
  %s1 = inlined_call_operand.hbm [shape: f32[128,128], index: 1, kind: input, shape index: {}]
  %s2 = inlined_call_operand.hbm [shape: f32[2,128,128], index: 2, kind: output, shape index: {}]
  %s3 = sld [smem:[#allocation0]]
  $region53: #{tpu_custom_call.1} parent=0
    _
  %s5 = ssub.s32 1, %s3
  %s6 = scalar_select 0, %s5, %s3
  $region1: #{tpu_custom_call.1} parent=0
    #allocation2 [shape = 'u8[8192]{0}', space=vmem, size = 0x2000, scoped, tag = 'input window, operand 0']
    #allocation3 [shape = 's32[2]{0}', space=sflag, size = 0x8, scoped, tag = 'scoped memory for tpu_custom_call.1']
    #allocation4 [shape = 's32[2]{0}', space=sflag, size = 0x8, scoped, tag = 'scoped memory for tpu_custom_call.1']
    #allocation5 [shape = 'u8[65536]{0}', space=vmem, size = 0x10000, scoped, tag = 'input window, operand 1, single buffered']
    #allocation6 [shape = 's32[1]{0}', space=sflag, size = 0x4, scoped, tag = 'scoped memory for tpu_custom_call.1']
    #allocation7 [shape = 'u8[131072]{0}', space=vmem, size = 0x20000, scoped, tag = 'output window, operand 0']
    %7 = vsyncpa [#allocation3], 0
    %s8 = scalar_lea.sflag [#allocation3], 1
    %9 = vsyncpa %s8, 0
    %10 = vsyncpa [#allocation6], 0
    %11 = vsyncpa [#allocation4], 0
    %s12 = scalar_lea.sflag [#allocation4], 1
    %13 = vsyncpa %s12, 0
    loop: start=0, step=1, limit=4
    $region2: #{tpu_custom_call.1} parent=1 // loop_pre_header
      _
    $region3: #{tpu_custom_call.1} parent=1 // loop_header
      %s15 = sphi 0, %s19
      %p16 = scmp.ge.s32.totalorder %s15, 4
      %s22 = sphi 0, %s34
      %s23 = sphi 0, %s30
      %s24 = sphi 0, %s22
      %s25 = sphi 0, %s23
      %s26 = sphi 0, %s24
      %s27 = sphi 0, %s25
      %s39 = sphi 0, %s41
      %s42 = sphi 0, %s39
      %s43 = sphi 0, %s42
      %s59 = sphi 0, %s43
      %s63 = sphi 0, %s63
      %s65 = sphi 0, %s63
      %s66 = sphi 0, %s65
      %s80 = sphi 0, %s66
      %s86 = sphi 0, %s88
      %s89 = sphi 0, %s86
      %s90 = sphi 0, %s89
      %s106 = sphi 0, %s90
    $region4: #{tpu_custom_call.1} parent=1 // loop_header_branch
      %18 = sbr.rel (%p16) target = $region8
    $region5: #{tpu_custom_call.1} parent=1 // loop_body
      %s20 = ssub.s32 %s15, 1
      %s21 = ssub.s32 %s15, 2
      %s28 = sadd.s32 1, %s23
      %p29 = scmp.ge.s32.totalorder %s28, 1
      %s30 = scalar_select %p29, 0, %s28
      %s31 = sadd.s32 1, %s22
      %s32 = scalar_select %p29, %s31, %s22
      %p33 = scmp.ge.s32.totalorder %s32, 2
      %s34 = scalar_select %p33, 0, %s32
      %s35 = sadd.s32 %s22, %s23
      %s36 = sadd.s32 %s34, %s30
      %s37 = ssub.s32 %s35, %s36
      %p38 = scmp.eq.s32.totalorder %s37, 0
      %s40 = sadd.s32 %s39, 1
      %s41 = scalar_select %p38, %s39, %s40
      %p44 = pneg %p38
      %p45 = scmp.eq.s32.totalorder %s15, 1
      %p46 = por %p44, %p45
      %p47 = scmp.ne.s32.totalorder %s39, %s42
      %p48 = scmp.eq.s32.totalorder %s15, 0
      %p49 = por %p47, %p48
      %p50 = scmp.ne.s32.totalorder %s39, %s42
      %p51 = scmp.eq.s32.totalorder %s20, 1
      %p52 = por %p50, %p51
      %p53 = scmp.ne.s32.totalorder %s42, %s43
      %p54 = scmp.eq.s32.totalorder %s20, 0
      %p55 = por %p53, %p54
      %p56 = scmp.ne.s32.totalorder %s42, %s43
      %p57 = scmp.eq.s32.totalorder %s21, 1
      %p58 = por %p56, %p57
      %p60 = scmp.ne.s32.totalorder %s43, %s59
      %p61 = scmp.eq.s32.totalorder %s21, 0
      %p62 = por %p60, %p61
      %s64 = sadd.s32 %s63, 1
      %p67 = scmp.eq.s32.totalorder %s15, 1
      %p68 = scmp.ne.s32.totalorder %s63, %s65
      %p69 = scmp.eq.s32.totalorder %s15, 0
      %p70 = por %p68, %p69
      %p71 = scmp.ne.s32.totalorder %s63, %s65
      %p72 = scmp.eq.s32.totalorder %s20, 1
      %p73 = por %p71, %p72
      %p74 = scmp.ne.s32.totalorder %s65, %s66
      %p75 = scmp.eq.s32.totalorder %s20, 0
      %p76 = por %p74, %p75
      %p77 = scmp.ne.s32.totalorder %s65, %s66
      %p78 = scmp.eq.s32.totalorder %s21, 1
      %p79 = por %p77, %p78
      %p81 = scmp.ne.s32.totalorder %s66, %s80
      %p82 = scmp.eq.s32.totalorder %s21, 0
      %p83 = por %p81, %p82
      %s84 = ssub.s32 %s22, %s34
      %p85 = scmp.eq.s32.totalorder %s84, 0
      %s87 = sadd.s32 %s86, 1
      %s88 = scalar_select %p85, %s86, %s87
      %p91 = pneg %p85
      %p92 = scmp.eq.s32.totalorder %s15, 1
      %p93 = por %p91, %p92
      %p94 = scmp.ne.s32.totalorder %s86, %s89
      %p95 = scmp.eq.s32.totalorder %s15, 0
      %p96 = por %p94, %p95
      %p97 = scmp.ne.s32.totalorder %s86, %s89
      %p98 = scmp.eq.s32.totalorder %s20, 1
      %p99 = por %p97, %p98
      %p100 = scmp.ne.s32.totalorder %s89, %s90
      %p101 = scmp.eq.s32.totalorder %s20, 0
      %p102 = por %p100, %p101
      %p103 = scmp.ne.s32.totalorder %s89, %s90
      %p104 = scmp.eq.s32.totalorder %s21, 1
      %p105 = por %p103, %p104
      %p107 = scmp.ne.s32.totalorder %s90, %s106
      %p108 = scmp.eq.s32.totalorder %s21, 0
      %p109 = por %p107, %p108
      %p110 = scmp.le.s32.totalorder 1, %s15
      %p111 = scmp.lt.s32.totalorder %s15, 3
      %p112 = pnand %p110, %p111
      %p113 = pneg %p112
      // Predicated region
      $region9: #{tpu_custom_call.1} parent=5 // pred_check
        _
      $region10: #{tpu_custom_call.1} parent=5 // pred_check_branch
        %115 = sbr.rel (%p112) target = $region12
      $region11: #{tpu_custom_call.1} parent=5 // pred_region
        %s116 = ssub.s32 %s15, 1
        // Predicated region
        $region13: #{tpu_custom_call.1} parent=11 // pred_check
          %p117 = pneg %p76
        $region14: #{tpu_custom_call.1} parent=11 // pred_check_branch
          %119 = sbr.rel (%p117) target = $region16
        $region15: #{tpu_custom_call.1} parent=11 // pred_region
          %s121 = ssub.s32 2048, 2048
          %122 = vsyncadd [#allocation6], %s121
          %s123 = sshll.u32 [#allocation5], 4
          %s124 = int_to_ptr.vmem [resolvable:$true] %s123
          %129 = dma.hbm_to_vmem [thread:$0]  %s1, 2048, %s124, [#allocation6], 128, 128, 8
        $region16: #{tpu_custom_call.1} parent=11 // pred_fallthru
          _
      $region12: #{tpu_custom_call.1} parent=5 // pred_fallthru
        _
      %p130 = scmp.lt.s32.totalorder %s15, 2
      // Predicated region
      $region17: #{tpu_custom_call.1} parent=5 // pred_check
        %p131 = pneg %p130
      $region18: #{tpu_custom_call.1} parent=5 // pred_check_branch
        %133 = sbr.rel (%p131) target = $region20
      $region19: #{tpu_custom_call.1} parent=5 // pred_region
        // Predicated region
        $region21: #{tpu_custom_call.1} parent=19 // pred_check
          %p134 = pneg %p49
        $region22: #{tpu_custom_call.1} parent=19 // pred_check_branch
          %136 = sbr.rel (%p134) target = $region24
        $region23: #{tpu_custom_call.1} parent=19 // pred_region
          %s137 = sand.u32 %s39, 1
          %s138 = scalar_lea.sflag [#allocation3], %s137
          %s139 = sand.u32 %s39, 1
          %s140 = smul.addr %s139, 8
          %s141 = scalar_lea.vmem [#allocation2], %s140
          %s142 = sadd.s32 %s22, %s23
          %s144 = ssub.s32 128, 128
          %145 = vsyncadd %s138, %s144
          %s146 = smul.addr %s142, 128
          %s147 = scalar_lea.hbm %s0, %s146
          %s149 = sshll.u32 %s141, 4
          %s150 = int_to_ptr.vmem [resolvable:$true] %s149
          %152 = dma.hbm_to_vmem [thread:$0]  %s147, 128, %s150, %s138
        $region24: #{tpu_custom_call.1} parent=19 // pred_fallthru
          _
      $region20: #{tpu_custom_call.1} parent=5 // pred_fallthru
        _
      %p153 = scmp.le.s32.totalorder 1, %s15
      %p154 = scmp.lt.s32.totalorder %s15, 3
      %p155 = pnand %p153, %p154
      %p156 = pneg %p155
      // Predicated region
      $region25: #{tpu_custom_call.1} parent=5 // pred_check
        _
      $region26: #{tpu_custom_call.1} parent=5 // pred_check_branch
        %158 = sbr.rel (%p155) target = $region28
      $region27: #{tpu_custom_call.1} parent=5 // pred_region
        %s159 = ssub.s32 %s15, 1
        %s160 = sand.u32 %s42, 1
        %s161 = scalar_lea.sflag [#allocation3], %s160
        %s162 = sand.u32 %s42, 1
        %s163 = smul.addr %s162, 8
        %s164 = scalar_lea.vmem [#allocation2], %s163
        // Predicated region
        $region29: #{tpu_custom_call.1} parent=27 // pred_check
          %p165 = pneg %p55
        $region30: #{tpu_custom_call.1} parent=27 // pred_check_branch
          %167 = sbr.rel (%p165) target = $region32
        $region31: #{tpu_custom_call.1} parent=27 // pred_region
          %168 = dma.done %s161, 128
        $region32: #{tpu_custom_call.1} parent=27 // pred_fallthru
          _
        // Predicated region
        $region33: #{tpu_custom_call.1} parent=27 // pred_check
          %p169 = pneg %p76
        $region34: #{tpu_custom_call.1} parent=27 // pred_check_branch
          %171 = sbr.rel (%p169) target = $region36
        $region35: #{tpu_custom_call.1} parent=27 // pred_region
          %172 = dma.done [#allocation6], 2048
        $region36: #{tpu_custom_call.1} parent=27 // pred_fallthru
          _
        %s173 = sand.u32 %s42, 1
        %s174 = scalar_lea.sflag [#allocation3], %s173
        %s175 = sand.u32 %s42, 1
        %s176 = smul.addr %s175, 8
        %s177 = scalar_lea.vmem [#allocation2], %s176
        %p178 = pneg %p55
        %p179 = pneg %p52
        %p180 = pneg %p76
        %p181 = pneg %p73
        %p182 = pneg %p102
        %p183 = pneg %p99
        %s184 = sand.u32 %s89, 1
        %s185 = scalar_lea.sflag [#allocation4], %s184
        %s186 = sand.u32 %s89, 1
        %s187 = smul.addr %s186, 128
        %s188 = scalar_lea.vmem [#allocation7], %s187
        %s189 = sadd.s32 %s24, %s25
        %p190 = scmp.eq.s32.totalorder %s25, 0
        // Predicated region
        $region37: #{tpu_custom_call.1} parent=27 // pred_check
          %p191 = pneg %p190
        $region38: #{tpu_custom_call.1} parent=27 // pred_check_branch
          %193 = sbr.rel (%p191) target = $region40
        $region39: #{tpu_custom_call.1} parent=27 // pred_region
          %194 = vst [vmem:[%s188] sm:$0xff] 0.0
          %195 = vst [vmem:[%s188 + $0x8] sm:$0xff] 0.0
          %196 = vst [vmem:[%s188 + $0x10] sm:$0xff] 0.0
          %197 = vst [vmem:[%s188 + $0x18] sm:$0xff] 0.0
          %198 = vst [vmem:[%s188 + $0x20] sm:$0xff] 0.0
          %199 = vst [vmem:[%s188 + $0x28] sm:$0xff] 0.0
          %200 = vst [vmem:[%s188 + $0x30] sm:$0xff] 0.0
          %201 = vst [vmem:[%s188 + $0x38] sm:$0xff] 0.0
          %202 = vst [vmem:[%s188 + $0x40] sm:$0xff] 0.0
          %203 = vst [vmem:[%s188 + $0x48] sm:$0xff] 0.0
          %204 = vst [vmem:[%s188 + $0x50] sm:$0xff] 0.0
          %205 = vst [vmem:[%s188 + $0x58] sm:$0xff] 0.0
          %206 = vst [vmem:[%s188 + $0x60] sm:$0xff] 0.0
          %207 = vst [vmem:[%s188 + $0x68] sm:$0xff] 0.0
          %208 = vst [vmem:[%s188 + $0x70] sm:$0xff] 0.0
          %209 = vst [vmem:[%s188 + $0x78] sm:$0xff] 0.0
        $region40: #{tpu_custom_call.1} parent=27 // pred_fallthru
          _
        %v210 = vld [vmem:[%s164] sm:$0xff]
        %v211 = vld [vmem:[#allocation5] sm:$0xff]
        %v212 = vld [vmem:[#allocation5 + $0x8] sm:$0xff]
        %v213 = vld [vmem:[#allocation5 + $0x10] sm:$0xff]
        %v214 = vld [vmem:[#allocation5 + $0x18] sm:$0xff]
        %v215 = vld [vmem:[#allocation5 + $0x20] sm:$0xff]
        %v216 = vld [vmem:[#allocation5 + $0x28] sm:$0xff]
        %v217 = vld [vmem:[#allocation5 + $0x30] sm:$0xff]
        %v218 = vld [vmem:[#allocation5 + $0x38] sm:$0xff]
        %v219 = vld [vmem:[#allocation5 + $0x40] sm:$0xff]
        %v220 = vld [vmem:[#allocation5 + $0x48] sm:$0xff]
        %v221 = vld [vmem:[#allocation5 + $0x50] sm:$0xff]
        %v222 = vld [vmem:[#allocation5 + $0x58] sm:$0xff]
        %v223 = vld [vmem:[#allocation5 + $0x60] sm:$0xff]
        %v224 = vld [vmem:[#allocation5 + $0x68] sm:$0xff]
        %v225 = vld [vmem:[#allocation5 + $0x70] sm:$0xff]
        %v226 = vld [vmem:[#allocation5 + $0x78] sm:$0xff]
        %227 = vmatprep.subr.mxu0 0.0
        %228 = vmatpush1.msra.mxu0 %v211
        %229 = vmatprep.subr.mxu0 0.0
        %230 = vmatpush1.msra.mxu0 %v212
        %231 = vmatprep.subr.mxu0 0.0
        %232 = vmatpush1.msra.mxu0 %v213
        %233 = vmatprep.subr.mxu0 0.0
        %234 = vmatpush1.msra.mxu0 %v214
        %235 = vmatprep.subr.mxu0 0.0
        %236 = vmatpush1.msra.mxu0 %v215
        %237 = vmatprep.subr.mxu0 0.0
        %238 = vmatpush1.msra.mxu0 %v216
        %239 = vmatprep.subr.mxu0 0.0
        %240 = vmatpush1.msra.mxu0 %v217
        %241 = vmatprep.subr.mxu0 0.0
        %242 = vmatpush1.msra.mxu0 %v218
        %243 = vmatprep.subr.mxu0 0.0
        %244 = vmatpush1.msra.mxu0 %v219
        %245 = vmatprep.subr.mxu0 0.0
        %246 = vmatpush1.msra.mxu0 %v220
        %247 = vmatprep.subr.mxu0 0.0
        %248 = vmatpush1.msra.mxu0 %v221
        %249 = vmatprep.subr.mxu0 0.0
        %250 = vmatpush1.msra.mxu0 %v222
        %251 = vmatprep.subr.mxu0 0.0
        %252 = vmatpush1.msra.mxu0 %v223
        %253 = vmatprep.subr.mxu0 0.0
        %254 = vmatpush1.msra.mxu0 %v224
        %255 = vmatprep.subr.mxu0 0.0
        %256 = vmatpush1.msra.mxu0 %v225
        %257 = vmatprep.subr.mxu0 0.0
        %258 = vmatpush1.msra.mxu0 %v226
        %259 = vmatprep.subr.mxu0 0.0
        %260 = vmatpush1.msra.mxu0 0.0
        %261 = vmatprep.subr.mxu0 0.0
        %262 = vmatpush1.msra.mxu0 0.0
        %263 = vmatprep.subr.mxu0 0.0
        %264 = vmatpush1.msra.mxu0 0.0
        %265 = vmatprep.subr.mxu0 0.0
        %266 = vmatpush1.msra.mxu0 0.0
        %267 = vmatprep.subr.mxu0 0.0
        %268 = vmatpush1.msra.mxu0 0.0
        %269 = vmatprep.subr.mxu0 0.0
        %270 = vmatpush1.msra.mxu0 0.0
        %271 = vmatprep.subr.mxu0 0.0
        %272 = vmatpush1.msra.mxu0 0.0
        %273 = vmatprep.subr.mxu0 0.0
        %274 = vmatpush1.msra.mxu0 0.0
        %275 = vmatprep.subr.mxu0 0.0
        %276 = vmatpush1.msra.mxu0 0.0
        %277 = vmatprep.subr.mxu0 0.0
        %278 = vmatpush1.msra.mxu0 0.0
        %279 = vmatprep.subr.mxu0 0.0
        %280 = vmatpush1.msra.mxu0 0.0
        %281 = vmatprep.subr.mxu0 0.0
        %282 = vmatpush1.msra.mxu0 0.0
        %283 = vmatprep.subr.mxu0 0.0
        %284 = vmatpush1.msra.mxu0 0.0
        %285 = vmatprep.subr.mxu0 0.0
        %286 = vmatpush1.msra.mxu0 0.0
        %287 = vmatprep.subr.mxu0 0.0
        %288 = vmatpush1.msra.mxu0 0.0
        %289 = vmatprep.subr.mxu0 0.0
        %290 = vmatpush1.msra.mxu0 0.0
        %291 = vmatprep.mubr.f32.mxu0 0.0
        %292 = vmatmul.mubr.f32.gmra.mrb[0].mxu0 %v210
        %v293 = vpop.f32.mrb[0].mxu0
        %v294 = vadd.f32 0.0, %v293
        %v295 = vpop.f32.mrb[0].mxu0
        %296 = vdwg.mxu0
        %297 = vxpose.xlu0.b32.start [1/16] %v294, 128
        %298 = vxpose.xlu0.b32.cont [2/16] 0.0, 128
        %299 = vxpose.xlu0.b32.cont [3/16] 0.0, 128
        %300 = vxpose.xlu0.b32.cont [4/16] 0.0, 128
        %301 = vxpose.xlu0.b32.cont [5/16] 0.0, 128
        %302 = vxpose.xlu0.b32.cont [6/16] 0.0, 128
        %303 = vxpose.xlu0.b32.cont [7/16] 0.0, 128
        %304 = vxpose.xlu0.b32.cont [8/16] 0.0, 128
        %305 = vxpose.xlu0.b32.cont [9/16] 0.0, 128
        %306 = vxpose.xlu0.b32.cont [10/16] 0.0, 128
        %307 = vxpose.xlu0.b32.cont [11/16] 0.0, 128
        %308 = vxpose.xlu0.b32.cont [12/16] 0.0, 128
        %309 = vxpose.xlu0.b32.cont [13/16] 0.0, 128
        %310 = vxpose.xlu0.b32.cont [14/16] 0.0, 128
        %311 = vxpose.xlu0.b32.cont [15/16] 0.0, 128
        %312 = vxpose.xlu0.b32.end [16/16] 0.0, 128
        %v313 = vpop.trf.xlu0
        %v314 = vpop.trf.xlu0
        %v315 = vpop.trf.xlu0
        %v316 = vpop.trf.xlu0
        %v317 = vpop.trf.xlu0
        %v318 = vpop.trf.xlu0
        %v319 = vpop.trf.xlu0
        %v320 = vpop.trf.xlu0
        %v321 = vpop.trf.xlu0
        %v322 = vpop.trf.xlu0
        %v323 = vpop.trf.xlu0
        %v324 = vpop.trf.xlu0
        %v325 = vpop.trf.xlu0
        %v326 = vpop.trf.xlu0
        %v327 = vpop.trf.xlu0
        %v328 = vpop.trf.xlu0
        %vm329 = vcmask 64512
        %v331 = vsel %vm329, %v313, 0
        %v334 = vsel %vm329, %v314, 0
        %v337 = vsel %vm329, %v315, 0
        %v340 = vsel %vm329, %v316, 0
        %v343 = vsel %vm329, %v317, 0
        %v346 = vsel %vm329, %v318, 0
        %v349 = vsel %vm329, %v319, 0
        %v352 = vsel %vm329, %v320, 0
        %v355 = vsel %vm329, %v321, 0
        %v358 = vsel %vm329, %v322, 0
        %v361 = vsel %vm329, %v323, 0
        %v364 = vsel %vm329, %v324, 0
        %v367 = vsel %vm329, %v325, 0
        %v370 = vsel %vm329, %v326, 0
        %v373 = vsel %vm329, %v327, 0
        %v376 = vsel %vm329, %v328, 0
        %378 = vmatprep.subr.mxu0 0.0
        %379 = vmatpush1.msra.mxu0 %v294
        %380 = vmatprep.subr.mxu0 0.0
        %381 = vmatpush1.msra.mxu0 0.0
        %382 = vmatprep.subr.mxu0 0.0
        %383 = vmatpush1.msra.mxu0 0.0
        %384 = vmatprep.subr.mxu0 0.0
        %385 = vmatpush1.msra.mxu0 0.0
        %386 = vmatprep.subr.mxu0 0.0
        %387 = vmatpush1.msra.mxu0 0.0
        %388 = vmatprep.subr.mxu0 0.0
        %389 = vmatpush1.msra.mxu0 0.0
        %390 = vmatprep.subr.mxu0 0.0
        %391 = vmatpush1.msra.mxu0 0.0
        %392 = vmatprep.subr.mxu0 0.0
        %393 = vmatpush1.msra.mxu0 0.0
        %394 = vmatprep.subr.mxu0 0.0
        %395 = vmatpush1.msra.mxu0 0.0
        %396 = vmatprep.subr.mxu0 0.0
        %397 = vmatpush1.msra.mxu0 0.0
        %398 = vmatprep.subr.mxu0 0.0
        %399 = vmatpush1.msra.mxu0 0.0
        %400 = vmatprep.subr.mxu0 0.0
        %401 = vmatpush1.msra.mxu0 0.0
        %402 = vmatprep.subr.mxu0 0.0
        %403 = vmatpush1.msra.mxu0 0.0
        %404 = vmatprep.subr.mxu0 0.0
        %405 = vmatpush1.msra.mxu0 0.0
        %406 = vmatprep.subr.mxu0 0.0
        %407 = vmatpush1.msra.mxu0 0.0
        %408 = vmatprep.subr.mxu0 0.0
        %409 = vmatpush1.msra.mxu0 0.0
        %410 = vmatprep.subr.mxu0 0.0
        %411 = vmatpush1.msra.mxu0 0.0
        %412 = vmatprep.subr.mxu0 0.0
        %413 = vmatpush1.msra.mxu0 0.0
        %414 = vmatprep.subr.mxu0 0.0
        %415 = vmatpush1.msra.mxu0 0.0
        %416 = vmatprep.subr.mxu0 0.0
        %417 = vmatpush1.msra.mxu0 0.0
        %418 = vmatprep.subr.mxu0 0.0
        %419 = vmatpush1.msra.mxu0 0.0
        %420 = vmatprep.subr.mxu0 0.0
        %421 = vmatpush1.msra.mxu0 0.0
        %422 = vmatprep.subr.mxu0 0.0
        %423 = vmatpush1.msra.mxu0 0.0
        %424 = vmatprep.subr.mxu0 0.0
        %425 = vmatpush1.msra.mxu0 0.0
        %426 = vmatprep.subr.mxu0 0.0
        %427 = vmatpush1.msra.mxu0 0.0
        %428 = vmatprep.subr.mxu0 0.0
        %429 = vmatpush1.msra.mxu0 0.0
        %430 = vmatprep.subr.mxu0 0.0
        %431 = vmatpush1.msra.mxu0 0.0
        %432 = vmatprep.subr.mxu0 0.0
        %433 = vmatpush1.msra.mxu0 0.0
        %434 = vmatprep.subr.mxu0 0.0
        %435 = vmatpush1.msra.mxu0 0.0
        %436 = vmatprep.subr.mxu0 0.0
        %437 = vmatpush1.msra.mxu0 0.0
        %438 = vmatprep.subr.mxu0 0.0
        %439 = vmatpush1.msra.mxu0 0.0
        %440 = vmatprep.subr.mxu0 0.0
        %441 = vmatpush1.msra.mxu0 0.0
        %442 = vmatprep.mubr.f32.mxu0 0.0
        %443 = vmatmul.mubr.f32.gmra.mrb[0].mxu0 %v331
        %v444 = vpop.f32.mrb[0].mxu0
        %v445 = vadd.f32 0.0, %v444
        %v446 = vpop.f32.mrb[0].mxu0
        %447 = vmatprep.mubr.f32.mxu0 0.0
        %448 = vmatmul.mubr.f32.gmra.mrb[0].mxu0 %v334
        %v449 = vpop.f32.mrb[0].mxu0
        %v450 = vadd.f32 0.0, %v449
        %v451 = vpop.f32.mrb[0].mxu0
        %452 = vmatprep.mubr.f32.mxu0 0.0
        %453 = vmatmul.mubr.f32.gmra.mrb[0].mxu0 %v337
        %v454 = vpop.f32.mrb[0].mxu0
        %v455 = vadd.f32 0.0, %v454
        %v456 = vpop.f32.mrb[0].mxu0
        %457 = vmatprep.mubr.f32.mxu0 0.0
        %458 = vmatmul.mubr.f32.gmra.mrb[0].mxu0 %v340
        %v459 = vpop.f32.mrb[0].mxu0
        %v460 = vadd.f32 0.0, %v459
        %v461 = vpop.f32.mrb[0].mxu0
        %462 = vmatprep.mubr.f32.mxu0 0.0
        %463 = vmatmul.mubr.f32.gmra.mrb[0].mxu0 %v343
        %v464 = vpop.f32.mrb[0].mxu0
        %v465 = vadd.f32 0.0, %v464
        %v466 = vpop.f32.mrb[0].mxu0
        %467 = vmatprep.mubr.f32.mxu0 0.0
        %468 = vmatmul.mubr.f32.gmra.mrb[0].mxu0 %v346
        %v469 = vpop.f32.mrb[0].mxu0
        %v470 = vadd.f32 0.0, %v469
        %v471 = vpop.f32.mrb[0].mxu0
        %472 = vmatprep.mubr.f32.mxu0 0.0
        %473 = vmatmul.mubr.f32.gmra.mrb[0].mxu0 %v349
        %v474 = vpop.f32.mrb[0].mxu0
        %v475 = vadd.f32 0.0, %v474
        %v476 = vpop.f32.mrb[0].mxu0
        %477 = vmatprep.mubr.f32.mxu0 0.0
        %478 = vmatmul.mubr.f32.gmra.mrb[0].mxu0 %v352
        %v479 = vpop.f32.mrb[0].mxu0
        %v480 = vadd.f32 0.0, %v479
        %v481 = vpop.f32.mrb[0].mxu0
        %482 = vmatprep.mubr.f32.mxu0 0.0
        %483 = vmatmul.mubr.f32.gmra.mrb[0].mxu0 %v355
        %v484 = vpop.f32.mrb[0].mxu0
        %v485 = vadd.f32 0.0, %v484
        %v486 = vpop.f32.mrb[0].mxu0
        %487 = vmatprep.mubr.f32.mxu0 0.0
        %488 = vmatmul.mubr.f32.gmra.mrb[0].mxu0 %v358
        %v489 = vpop.f32.mrb[0].mxu0
        %v490 = vadd.f32 0.0, %v489
        %v491 = vpop.f32.mrb[0].mxu0
        %492 = vmatprep.mubr.f32.mxu0 0.0
        %493 = vmatmul.mubr.f32.gmra.mrb[0].mxu0 %v361
        %v494 = vpop.f32.mrb[0].mxu0
        %v495 = vadd.f32 0.0, %v494
        %v496 = vpop.f32.mrb[0].mxu0
        %497 = vmatprep.mubr.f32.mxu0 0.0
        %498 = vmatmul.mubr.f32.gmra.mrb[0].mxu0 %v364
        %v499 = vpop.f32.mrb[0].mxu0
        %v500 = vadd.f32 0.0, %v499
        %v501 = vpop.f32.mrb[0].mxu0
        %502 = vmatprep.mubr.f32.mxu0 0.0
        %503 = vmatmul.mubr.f32.gmra.mrb[0].mxu0 %v367
        %v504 = vpop.f32.mrb[0].mxu0
        %v505 = vadd.f32 0.0, %v504
        %v506 = vpop.f32.mrb[0].mxu0
        %507 = vmatprep.mubr.f32.mxu0 0.0
        %508 = vmatmul.mubr.f32.gmra.mrb[0].mxu0 %v370
        %v509 = vpop.f32.mrb[0].mxu0
        %v510 = vadd.f32 0.0, %v509
        %v511 = vpop.f32.mrb[0].mxu0
        %512 = vmatprep.mubr.f32.mxu0 0.0
        %513 = vmatmul.mubr.f32.gmra.mrb[0].mxu0 %v373
        %v514 = vpop.f32.mrb[0].mxu0
        %v515 = vadd.f32 0.0, %v514
        %v516 = vpop.f32.mrb[0].mxu0
        %517 = vmatprep.mubr.f32.mxu0 0.0
        %518 = vmatmul.mubr.f32.gmra.mrb[0].mxu0 %v376
        %v519 = vpop.f32.mrb[0].mxu0
        %v520 = vadd.f32 0.0, %v519
        %v521 = vpop.f32.mrb[0].mxu0
        %522 = vdwg.mxu0
        %v523 = vld [vmem:[%s188] sm:$0xff]
        %v524 = vld [vmem:[%s188 + $0x8] sm:$0xff]
        %v525 = vld [vmem:[%s188 + $0x10] sm:$0xff]
        %v526 = vld [vmem:[%s188 + $0x18] sm:$0xff]
        %v527 = vld [vmem:[%s188 + $0x20] sm:$0xff]
        %v528 = vld [vmem:[%s188 + $0x28] sm:$0xff]
        %v529 = vld [vmem:[%s188 + $0x30] sm:$0xff]
        %v530 = vld [vmem:[%s188 + $0x38] sm:$0xff]
        %v531 = vld [vmem:[%s188 + $0x40] sm:$0xff]
        %v532 = vld [vmem:[%s188 + $0x48] sm:$0xff]
        %v533 = vld [vmem:[%s188 + $0x50] sm:$0xff]
        %v534 = vld [vmem:[%s188 + $0x58] sm:$0xff]
        %v535 = vld [vmem:[%s188 + $0x60] sm:$0xff]
        %v536 = vld [vmem:[%s188 + $0x68] sm:$0xff]
        %v537 = vld [vmem:[%s188 + $0x70] sm:$0xff]
        %v538 = vld [vmem:[%s188 + $0x78] sm:$0xff]
        %v539 = vadd.f32 %v523, %v445
        %v540 = vadd.f32 %v524, %v450
        %v541 = vadd.f32 %v525, %v455
        %v542 = vadd.f32 %v526, %v460
        %v543 = vadd.f32 %v527, %v465
        %v544 = vadd.f32 %v528, %v470
        %v545 = vadd.f32 %v529, %v475
        %v546 = vadd.f32 %v530, %v480
        %v547 = vadd.f32 %v531, %v485
        %v548 = vadd.f32 %v532, %v490
        %v549 = vadd.f32 %v533, %v495
        %v550 = vadd.f32 %v534, %v500
        %v551 = vadd.f32 %v535, %v505
        %v552 = vadd.f32 %v536, %v510
        %v553 = vadd.f32 %v537, %v515
        %v554 = vadd.f32 %v538, %v520
        %555 = vst [vmem:[%s188] sm:$0xff] %v539
        %556 = vst [vmem:[%s188 + $0x8] sm:$0xff] %v540
        %557 = vst [vmem:[%s188 + $0x10] sm:$0xff] %v541
        %558 = vst [vmem:[%s188 + $0x18] sm:$0xff] %v542
        %559 = vst [vmem:[%s188 + $0x20] sm:$0xff] %v543
        %560 = vst [vmem:[%s188 + $0x28] sm:$0xff] %v544
        %561 = vst [vmem:[%s188 + $0x30] sm:$0xff] %v545
        %562 = vst [vmem:[%s188 + $0x38] sm:$0xff] %v546
        %563 = vst [vmem:[%s188 + $0x40] sm:$0xff] %v547
        %564 = vst [vmem:[%s188 + $0x48] sm:$0xff] %v548
        %565 = vst [vmem:[%s188 + $0x50] sm:$0xff] %v549
        %566 = vst [vmem:[%s188 + $0x58] sm:$0xff] %v550
        %567 = vst [vmem:[%s188 + $0x60] sm:$0xff] %v551
        %568 = vst [vmem:[%s188 + $0x68] sm:$0xff] %v552
        %569 = vst [vmem:[%s188 + $0x70] sm:$0xff] %v553
        %570 = vst [vmem:[%s188 + $0x78] sm:$0xff] %v554
        %s571 = sand.u32 %s89, 1
        %s572 = scalar_lea.sflag [#allocation4], %s571
        %s573 = sand.u32 %s89, 1
        %s574 = smul.addr %s573, 128
        %s575 = scalar_lea.vmem [#allocation7], %s574
        // Predicated region
        $region41: #{tpu_custom_call.1} parent=27 // pred_check
          %p576 = pneg %p99
        $region42: #{tpu_custom_call.1} parent=27 // pred_check_branch
          %578 = sbr.rel (%p576) target = $region44
        $region43: #{tpu_custom_call.1} parent=27 // pred_region
          %s580 = ssub.s32 2048, 2048
          %581 = vsyncadd %s572, %s580
          %s582 = smul.addr %s24, 16
          %s583 = smul.addr %s582, 128
          %s584 = scalar_lea.hbm %s2, %s583
          %s585 = sshll.u32 %s575, 4
          %s586 = int_to_ptr.vmem [resolvable:$true] %s585
          %591 = dma.vmem_to_hbm [thread:$0]  %s586, 2048, %s584, %s572, 128, 128, 8
        $region44: #{tpu_custom_call.1} parent=27 // pred_fallthru
          _
      $region28: #{tpu_custom_call.1} parent=5 // pred_fallthru
        _
      %p592 = scmp.le.s32.totalorder 2, %s15
      // Predicated region
      $region45: #{tpu_custom_call.1} parent=5 // pred_check
        %p593 = pneg %p592
      $region46: #{tpu_custom_call.1} parent=5 // pred_check_branch
        %595 = sbr.rel (%p593) target = $region48
      $region47: #{tpu_custom_call.1} parent=5 // pred_region
        %s596 = ssub.s32 %s15, 2
        // Predicated region
        $region49: #{tpu_custom_call.1} parent=47 // pred_check
          %p597 = pneg %p105
        $region50: #{tpu_custom_call.1} parent=47 // pred_check_branch
          %599 = sbr.rel (%p597) target = $region52
        $region51: #{tpu_custom_call.1} parent=47 // pred_region
          %s600 = sand.u32 %s90, 1
          %s601 = scalar_lea.sflag [#allocation4], %s600
          %s602 = sand.u32 %s90, 1
          %s603 = smul.addr %s602, 128
          %s604 = scalar_lea.vmem [#allocation7], %s603
          %605 = dma.done %s601, 2048
        $region52: #{tpu_custom_call.1} parent=47 // pred_fallthru
          _
      $region48: #{tpu_custom_call.1} parent=5 // pred_fallthru
        _
    $region6: #{tpu_custom_call.1} parent=1 // loop_footer
      %s19 = sadd.s32 1, %s15
    $region7: #{tpu_custom_call.1} parent=1 // loop_footer_branch
      %14 = sbr.rel target = $region3
    $region8: #{tpu_custom_call.1} parent=1 // loop_exit
      _
    %606 = vsyncpa [#allocation3], 1
    %s607 = scalar_lea.sflag [#allocation3], 1
    %608 = vsyncpa %s607, 1
    %609 = vsyncpa [#allocation6], 1
    %610 = vsyncpa [#allocation4], 1
    %s611 = scalar_lea.sflag [#allocation4], 1
    %612 = vsyncpa %s611, 1

</llo_original>
